<compile_context>
chip_gen: v6e
topology: v6e:2x2x1
jax: 0.10.0
libtpu: 0.0.40
codegen_flags: <defaults>
</compile_context>

<pallas_src>
import functools

import jax
import jax.numpy as jnp
from jax.experimental import pallas as pl
from jax.experimental.pallas import tpu as pltpu


def _gemv_kernel(x_ref, w_ref, b_ref, o_ref):
    # x_ref: (TILE_B, F) VMEM tile of input rows (streamed each grid step).
    # w_ref: (1, F)      VMEM lane-dense weight row (resident across steps).
    # b_ref: (1, 1)      SMEM scalar bias.
    # o_ref: (1, TILE_B) VMEM lane-dense output row for this tile.
    x = x_ref[...].astype(jnp.float32)   # single upcast per tile (v5e: no bf16 VPU)
    w = w_ref[...].astype(jnp.float32)
    # VPU multiply (w broadcasts over rows) + XLU lane reduction; MXU unused.
    acc = jnp.sum(x * w, axis=-1, keepdims=True)          # (TILE_B, 1) f32
    acc = acc + b_ref[0, 0]
    # Column -> row transpose (one small XLU op, otherwise idle slot) so the
    # store is a full-width lane-dense vst instead of masked column stores.
    o_ref[...] = jnp.transpose(acc).astype(o_ref.dtype)   # (1, TILE_B)


def _pick_tile_b(batch, features, itemsize):
    """Row-tile size: ~4 MiB of x per tile (x2 for double buffering), so the
    working set fits scoped VMEM on every TPU generation (incl. v7x)."""
    budget = 4 * 1024 * 1024
    if batch <= 1024 and batch * features * itemsize <= budget:
        return batch  # single block: block dims == full array dims (always legal)
    rows = budget // max(1, features * itemsize)
    rows = max(128, min(2048, (rows // 128) * 128))  # multiple of 128 => lane-dense out blocks
    rows = min(rows, ((batch + 127) // 128) * 128)
    # TODO(synk): for extremely large feature counts the feature axis would
    # also need tiling with an accumulator grid axis; not needed here.
    return rows


@functools.partial(jax.jit, static_argnames=("tile_b",))
def food_recommender_forward(x, weight, bias, *, tile_b=None):
    """y = x @ weight.T + bias, with weight (1, F) and bias (1,) as in nn.Linear(F, 1)."""
    B, F = x.shape
    if tile_b is None:
        tile_b = _pick_tile_b(B, F, x.dtype.itemsize)
    num_tiles = pl.cdiv(B, tile_b)
    b_pad = num_tiles * tile_b
    x_p = jnp.pad(x, ((0, b_pad - B), (0, 0))) if b_pad != B else x

    out_row = pl.pallas_call(
        _gemv_kernel,
        out_shape=jax.ShapeDtypeStruct((1, b_pad), x.dtype),
        grid=(num_tiles,),
        in_specs=[
            pl.BlockSpec((tile_b, F), lambda i: (i, 0)),         # stream x row tiles
            pl.BlockSpec((1, F), lambda i: (0, 0)),              # weight stays resident
            pl.BlockSpec(memory_space=pltpu.MemorySpace.SMEM),   # scalar bias on scalar path
        ],
        out_specs=pl.BlockSpec((1, tile_b), lambda i: (0, i)),   # lane-dense output row
        compiler_params=pltpu.CompilerParams(
            dimension_semantics=("parallel",),     # shard row tiles across TCs (v7x)
            vmem_limit_bytes=32 * 1024 * 1024,     # headroom over v5e's 16 MiB default
        ),
    )(x_p, weight, bias.reshape(1, 1))

    return out_row[0, :B].reshape(B, 1)


if __name__ == "__main__":
    key = jax.random.PRNGKey(0)
    k_x, k_w, k_b, k_x2 = jax.random.split(key, 4)

    # Small shapes consistent with the module: batch=8, input_size=32 features.
    batch, input_size = 8, 32
    bound = 1.0 / (input_size ** 0.5)
    weight = jax.random.uniform(k_w, (1, input_size), jnp.float32, -bound, bound)
    bias = jax.random.uniform(k_b, (1,), jnp.float32, -bound, bound)
    x = jax.random.normal(k_x, (batch, input_size), jnp.float32)

    y = food_recommender_forward(x, weight, bias)
    jax.block_until_ready(y)

    # Exact f32 elementwise reference (same math as PyTorch's fc(x)).
    y_ref = jnp.sum(x * weight, axis=-1, keepdims=True) + bias
    assert y.shape == (batch, 1)
    assert jnp.allclose(y, y_ref, atol=1e-5, rtol=1e-5)

    # Also exercise the multi-tile / pipelined path (3 x 128-row tiles).
    x2 = jax.random.normal(k_x2, (384, input_size), jnp.float32)
    y2 = food_recommender_forward(x2, weight, bias, tile_b=128)
    jax.block_until_ready(y2)
    y2_ref = jnp.sum(x2 * weight, axis=-1, keepdims=True) + bias
    assert y2.shape == (384, 1)
    assert jnp.allclose(y2, y2_ref, atol=1e-5, rtol=1e-5)

    print("KERNEL_OK")
</pallas_src>

<mosaic_0001>
module attributes {stable_mosaic.version = 11 : i64} {
  func.func @_gemv_kernel(%arg0: i32, %arg1: memref<8x32xf32, #tpu.memory_space<vmem>>, %arg2: memref<1x32xf32, #tpu.memory_space<vmem>>, %arg3: memref<1x1xf32, #tpu.memory_space<smem>>, %arg4: memref<1x8xf32, #tpu.memory_space<vmem>>) attributes {dimension_semantics = [#tpu.dimension_semantics<parallel>], iteration_bounds = array<i64: 1>, scalar_prefetch = 0 : i64, scratch_operands = 0 : i64, tpu.core_type = #tpu.core_type<tc>, window_params = [{transform_indices = @transform_0, window_bounds = array<i64: 8, 32>}, {pipeline_mode = #tpu.pipeline_mode<synchronous>, transform_indices = @transform_1, window_bounds = array<i64: 1, 32>}, {transform_indices = @transform_2, window_bounds = array<i64: 1, 1>}, {transform_indices = @transform_3, window_bounds = array<i64: 1, 8>}]} {
    %c0 = arith.constant 0 : index
    %c0_0 = arith.constant 0 : index
    %0 = vector.load %arg1[%c0, %c0_0] : memref<8x32xf32, #tpu.memory_space<vmem>>, vector<8x32xf32>
    %c0_1 = arith.constant 0 : index
    %c0_2 = arith.constant 0 : index
    %1 = vector.load %arg2[%c0_1, %c0_2] : memref<1x32xf32, #tpu.memory_space<vmem>>, vector<1x32xf32>
    %2 = vector.broadcast %1 : vector<1x32xf32> to vector<8x32xf32>
    %3 = arith.mulf %0, %2 : vector<8x32xf32>
    %cst = arith.constant dense<0.000000e+00> : vector<8xf32>
    %4 = vector.multi_reduction <add>, %3, %cst [1] : vector<8x32xf32> to vector<8xf32>
    %5 = vector.shape_cast %4 : vector<8xf32> to vector<8x1xf32>
    %c0_3 = arith.constant 0 : index
    %c0_4 = arith.constant 0 : index
    %6 = memref.load %arg3[%c0_3, %c0_4] : memref<1x1xf32, #tpu.memory_space<smem>>
    %7 = vector.broadcast %6 : f32 to vector<8x1xf32>
    %8 = arith.addf %5, %7 : vector<8x1xf32>
    %9 = tpu.transpose %8, [1, 0] : vector<8x1xf32> -> vector<1x8xf32>
    %c0_5 = arith.constant 0 : index
    %c0_6 = arith.constant 0 : index
    %10 = vector.load %arg4[%c0_5, %c0_6] : memref<1x8xf32, #tpu.memory_space<vmem>>, vector<1x8xf32>
    tpu.vector_store %arg4[%c0_5, %c0_6], %9 {strides = array<i32>} : memref<1x8xf32, #tpu.memory_space<vmem>>, vector<1x8xf32>,
    return
  }
  func.func @transform_0(%arg0: i32) -> (i32, i32) {
    %c0_i32 = arith.constant 0 : i32
    %c0_i32_0 = arith.constant 0 : i32
    return %arg0, %c0_i32 : i32, i32
  }
  func.func @transform_1(%arg0: i32) -> (i32, i32) {
    %c0_i32 = arith.constant 0 : i32
    %c0_i32_0 = arith.constant 0 : i32
    %c0_i32_1 = arith.constant 0 : i32
    return %c0_i32, %c0_i32_0 : i32, i32
  }
  func.func @transform_2(%arg0: i32) -> (i32, i32) {
    %c0_i32 = arith.constant 0 : i32
    %c0_i32_0 = arith.constant 0 : i32
    %c0_i32_1 = arith.constant 0 : i32
    return %c0_i32, %c0_i32_0 : i32, i32
  }
  func.func @transform_3(%arg0: i32) -> (i32, i32) {
    %c0_i32 = arith.constant 0 : i32
    %c0_i32_0 = arith.constant 0 : i32
    return %c0_i32, %arg0 : i32, i32
  }
}

</mosaic_0001>

<llo_original>
// kernel: food_recommender_forward.1
$region0: #{food_recommender_forward.1}
  #allocation0 [shape = 'u32[]', space=smem, size = 0x4, offset = 0x4, fixed_abs, tag = 'smem constant byte address 0x4 - core index']
  #allocation1 [shape = 'u32[144,128]{1,0:T(1,128)}', space=vmem, size = 0x12000, scoped, tag = 'internal scratch']
  #allocation2 [shape = 'f32[1,1]{1,0:T(1,128)S(6)}', space=smem, size = 0x200, scoped, tag = 'scoped memory for food_recommender_forward.1']
  %s0 = inlined_call_operand.hbm [shape: f32[8,32], index: 0, kind: input, shape index: {}]
  %s1 = inlined_call_operand.vmem [shape: f32[1,32], index: 1, kind: input, shape index: {}]
  %s2 = inlined_call_operand.<no memory space> [shape: f32[1,1], index: 2, kind: input, shape index: {}]
  %s3 = inlined_call_operand.hbm [shape: f32[1,8], index: 3, kind: output, shape index: {}]
  %s4 = sld [smem:[#allocation0]]
  $region26: #{food_recommender_forward.1} parent=0
    _
  %s6 = ssub.s32 1, %s4
  %s7 = scalar_select 0, %s6, %s4
  %8 = sst [smem:[#allocation2]] %s2
  $region1: #{food_recommender_forward.1} parent=0
    #allocation3 [shape = 'u8[4096]{0}', space=vmem, size = 0x1000, scoped, tag = 'input window, operand 0, single buffered']
    #allocation4 [shape = 's32[1]{0}', space=sflag, size = 0x4, scoped, tag = 'scoped memory for food_recommender_forward.1']
    #allocation5 [shape = 's32[1]{0}', space=sflag, size = 0x4, scoped, tag = 'scoped memory for food_recommender_forward.1']
    #allocation6 [shape = 'u8[512]{0}', space=vmem, size = 0x400, scoped, tag = 'output window, operand 0, single buffered']
    %9 = vsyncpa [#allocation4], 0
    %10 = vsyncpa [#allocation5], 0
    // Predicated region
    $region2: #{food_recommender_forward.1} parent=1 // pred_check
      _
    $region3: #{food_recommender_forward.1} parent=1 // pred_check_branch
      %12 = sbr.rel (0) target = $region5
    $region4: #{food_recommender_forward.1} parent=1 // pred_region
      %s14 = ssub.s32 128, 128
      %15 = vsyncadd [#allocation4], %s14
      %s17 = sshll.u32 [#allocation3], 4
      %s18 = int_to_ptr.vmem [resolvable:$true] %s17
      %20 = dma.hbm_to_vmem [thread:$0]  %s0, 128, %s18, [#allocation4]
    $region5: #{food_recommender_forward.1} parent=1 // pred_fallthru
      _
    // Predicated region
    $region6: #{food_recommender_forward.1} parent=1 // pred_check
      _
    $region7: #{food_recommender_forward.1} parent=1 // pred_check_branch
      %22 = sbr.rel (0) target = $region9
    $region8: #{food_recommender_forward.1} parent=1 // pred_region
      _
    $region9: #{food_recommender_forward.1} parent=1 // pred_fallthru
      _
    // Predicated region
    $region10: #{food_recommender_forward.1} parent=1 // pred_check
      _
    $region11: #{food_recommender_forward.1} parent=1 // pred_check_branch
      %24 = sbr.rel (0) target = $region13
    $region12: #{food_recommender_forward.1} parent=1 // pred_region
      _
    $region13: #{food_recommender_forward.1} parent=1 // pred_fallthru
      _
    // Predicated region
    $region14: #{food_recommender_forward.1} parent=1 // pred_check
      _
    $region15: #{food_recommender_forward.1} parent=1 // pred_check_branch
      %26 = sbr.rel (0) target = $region17
    $region16: #{food_recommender_forward.1} parent=1 // pred_region
      %27 = dma.done [#allocation4], 128
    $region17: #{food_recommender_forward.1} parent=1 // pred_fallthru
      _
    %v28 = vld [vmem:[#allocation3] sm:$0xff]
    %v29 = vld [vmem:[%s1] sm:$0x1]
    %v31 = vlaneseq
    %v32 = vshrl.u32 %v31, 7
    %v33 = vsub.s32 0, %v32
    %v34 = vrot.slane %v29, %v33
    %v36 = vmul.f32 %v28, %v34
    %vm37 = vcmask 261120
    %v38 = vsel %vm37, %v36, 0.0
    %39 = vadd.xlane.f32.xlu0 %v38
    %v40 = vpop.xlane.xlu0 %39
    %s41 = sld [smem:[#allocation2]]
    %v42 = vstv %s41
    %v43 = vadd.f32 %v40, %v42
    %44 = vxpose.xlu0.b32.start [1/16] %v43, 128
    %45 = vxpose.xlu0.b32.cont [2/16] 0.0, 128
    %46 = vxpose.xlu0.b32.cont [3/16] 0.0, 128
    %47 = vxpose.xlu0.b32.cont [4/16] 0.0, 128
    %48 = vxpose.xlu0.b32.cont [5/16] 0.0, 128
    %49 = vxpose.xlu0.b32.cont [6/16] 0.0, 128
    %50 = vxpose.xlu0.b32.cont [7/16] 0.0, 128
    %51 = vxpose.xlu0.b32.cont [8/16] 0.0, 128
    %52 = vxpose.xlu0.b32.cont [9/16] 0.0, 128
    %53 = vxpose.xlu0.b32.cont [10/16] 0.0, 128
    %54 = vxpose.xlu0.b32.cont [11/16] 0.0, 128
    %55 = vxpose.xlu0.b32.cont [12/16] 0.0, 128
    %56 = vxpose.xlu0.b32.cont [13/16] 0.0, 128
    %57 = vxpose.xlu0.b32.cont [14/16] 0.0, 128
    %58 = vxpose.xlu0.b32.cont [15/16] 0.0, 128
    %59 = vxpose.xlu0.b32.end [16/16] 0.0, 128
    %v60 = vpop.trf.xlu0
    %v61 = vpop.trf.xlu0
    %v62 = vpop.trf.xlu0
    %v63 = vpop.trf.xlu0
    %v64 = vpop.trf.xlu0
    %v65 = vpop.trf.xlu0
    %v66 = vpop.trf.xlu0
    %v67 = vpop.trf.xlu0
    %v68 = vpop.trf.xlu0
    %v69 = vpop.trf.xlu0
    %v70 = vpop.trf.xlu0
    %v71 = vpop.trf.xlu0
    %v72 = vpop.trf.xlu0
    %v73 = vpop.trf.xlu0
    %v74 = vpop.trf.xlu0
    %v75 = vpop.trf.xlu0
    %vm76 = vcmask 57344
    %77 = vst.msk [vmem:[#allocation6] sm:$0x1] %vm76, %v60
    // Predicated region
    $region18: #{food_recommender_forward.1} parent=1 // pred_check
      _
    $region19: #{food_recommender_forward.1} parent=1 // pred_check_branch
      %79 = sbr.rel (0) target = $region21
    $region20: #{food_recommender_forward.1} parent=1 // pred_region
      %s81 = ssub.s32 16, 16
      %82 = vsyncadd [#allocation5], %s81
      %s84 = sshll.u32 [#allocation6], 4
      %s85 = int_to_ptr.vmem [resolvable:$true] %s84
      %87 = dma.vmem_to_hbm [thread:$0]  %s85, 16, %s3, [#allocation5]
    $region21: #{food_recommender_forward.1} parent=1 // pred_fallthru
      _
    // Predicated region
    $region22: #{food_recommender_forward.1} parent=1 // pred_check
      _
    $region23: #{food_recommender_forward.1} parent=1 // pred_check_branch
      %89 = sbr.rel (0) target = $region25
    $region24: #{food_recommender_forward.1} parent=1 // pred_region
      %90 = dma.done [#allocation5], 16
    $region25: #{food_recommender_forward.1} parent=1 // pred_fallthru
      _
    %91 = vsyncpa [#allocation4], 1
    %92 = vsyncpa [#allocation5], 1

</llo_original>
